<compile_context>
chip_gen: v6e
topology: v6e:2x2x1
jax: 0.10.0
libtpu: 0.0.40
codegen_flags: <defaults>
</compile_context>

<pallas_src>
import math
import numpy as np

import jax
import jax.numpy as jnp
from jax.experimental import pallas as pl
from jax.experimental.pallas import tpu as pltpu

LANE = 128     # TPU lane width: every channel-like dim is zero-padded to this
STRIDE = 2     # conv stride fixed by the module
KSIZE = 3      # kernel size the fused kernel is written for (pad = 1, reflect)


# ----------------------------------------------------------------------------
# Skeleton topology helpers (pure Python, identical logic to the PyTorch code)
# ----------------------------------------------------------------------------
def calc_edge_mat(edges):
    edge_num = len(edges)
    edge_mat = [[100000] * edge_num for _ in range(edge_num)]
    for i in range(edge_num):
        edge_mat[i][i] = 0
    for i, a in enumerate(edges):
        for j, b in enumerate(edges):
            link = 0
            for x in range(2):
                for y in range(2):
                    if a[x] == b[y]:
                        link = 1
            if link:
                edge_mat[i][j] = 1
    for k in range(edge_num):
        for i in range(edge_num):
            for j in range(edge_num):
                edge_mat[i][j] = min(edge_mat[i][j], edge_mat[i][k] + edge_mat[k][j])
    return edge_mat


def find_neighbor(edges, d):
    edge_mat = calc_edge_mat(edges)
    neighbor_list = []
    edge_num = len(edge_mat)
    for i in range(edge_num):
        neighbor = []
        for j in range(edge_num):
            if edge_mat[i][j] <= d:
                neighbor.append(j)
        neighbor_list.append(neighbor)
    global_part_neighbor = neighbor_list[0].copy()
    for i in global_part_neighbor:
        neighbor_list[i].append(edge_num)
    neighbor_list.append(global_part_neighbor)
    return neighbor_list


def build_skeleton_pool(edges, channels_per_edge, last_pool=False):
    """Reproduces SkeletonPool.__init__: returns (pool weight, new_edges)."""
    edge_num = len(edges) + 1
    seq_list = []
    pooling_list = []
    new_edges = []
    degree = [0] * 100
    for e in edges:
        degree[e[0]] += 1
        degree[e[1]] += 1

    def find_seq(j, seq):
        if degree[j] > 2 and j != 0:
            seq_list.append(seq)
            seq = []
        if degree[j] == 1:
            seq_list.append(seq)
            return
        for idx, e in enumerate(edges):
            if e[0] == j:
                find_seq(e[1], seq + [idx])

    find_seq(0, [])
    for seq in seq_list:
        if last_pool:
            pooling_list.append(seq)
            continue
        if len(seq) % 2 == 1:
            pooling_list.append([seq[0]])
            new_edges.append(edges[seq[0]])
            seq = seq[1:]
        for i in range(0, len(seq), 2):
            pooling_list.append([seq[i], seq[i + 1]])
            new_edges.append([edges[seq[i]][0], edges[seq[i + 1]][1]])
    pooling_list.append([edge_num - 1])

    weight = np.zeros(
        (len(pooling_list) * channels_per_edge, edge_num * channels_per_edge),
        dtype=np.float32,
    )
    for i, pair in enumerate(pooling_list):
        for j in pair:
            for c in range(channels_per_edge):
                weight[i * channels_per_edge + c, j * channels_per_edge + c] = 1.0 / len(pair)
    return weight, new_edges


def build_skeleton_conv_mask(neighbor_list, in_channels, out_channels, joint_num, kernel_size):
    """Reproduces SkeletonConv mask construction."""
    in_cpj = in_channels // joint_num
    out_cpj = out_channels // joint_num
    mask = np.zeros((out_channels, in_channels, kernel_size), dtype=np.float32)
    for i, neighbour in enumerate(neighbor_list):
        expanded = []
        for k in neighbour:
            for c in range(in_cpj):
                expanded.append(k * in_cpj + c)
        mask[out_cpj * i:out_cpj * (i + 1), expanded, :] = 1.0
    return mask


# ----------------------------------------------------------------------------
# The fused Pallas kernel: the ENTIRE 2-layer discriminator forward.
# ----------------------------------------------------------------------------
def _fused_discriminator_kernel(
    xq_ref,   # (B, 4, T2, 128) bf16  input de-interleaved by (time mod 4)
    w1_ref,   # (384, 128)      bf16  layer-0 conv weight, taps stacked on rows
    p1_ref,   # (128, 128)      bf16  layer-0 pool matrix^T
    w2_ref,   # (384, 128)      bf16  layer-1 conv weight with pool folded in
    b2_ref,   # (1, 128)        f32   layer-1 bias folded through the pool
    o_ref,    # (B*T2, 128)     f32   sigmoid output
):
    B = xq_ref.shape[0]
    T2 = xq_ref.shape[2]       # layer-1 output length; layer-0 output length = 2*T2

    xq = xq_ref[...]                                    # (B, 4, T2, 128) bf16
    x0, x1, x2, x3 = xq[:, 0], xq[:, 1], xq[:, 2], xq[:, 3]   # planes: t = 4u+m

    def shift1(first_row, plane):
        # rows [first_row[0], plane[0], ..., plane[T2-2]]  (reflect-left / shift)
        return jnp.concatenate([first_row[:, 0:1, :], plane[:, :T2 - 1, :]], axis=1)

    # ---- layer 0: SkeletonConv(k=3, stride=2, reflect pad=1, bias=False) ----
    # Output rows are grouped [even t ; odd t] per batch so every tap of both
    # this layer and the next is a contiguous slab (reflect pad folded in):
    #   even outputs t=2u: taps (x[4u-1], x[4u], x[4u+1]) -> (x3<<1 | x1[0], x0, x1)
    #   odd  outputs t=2u+1: taps (x[4u+1], x[4u+2], x[4u+3]) -> (x1, x2, x3)
    lhs_e = jnp.concatenate([shift1(x1, x3), x0, x1], axis=-1)      # (B, T2, 384)
    lhs_o = jnp.concatenate([x1, x2, x3], axis=-1)                  # (B, T2, 384)
    lhs1 = jnp.concatenate([lhs_e, lhs_o], axis=1).reshape(B * 2 * T2, 3 * LANE)

    # one 384-deep bf16 MXU pass, f32 accumulation
    y = jnp.dot(lhs1, w1_ref[...], preferred_element_type=jnp.float32)

    # ---- BatchNorm1d: training-mode batch stats, gamma=1, beta=0, eps=1e-5 ----
    # (matches the freshly-constructed torch module in .train(); running-stat /
    #  trained-affine eval mode is intentionally not modeled.)
    mean = jnp.mean(y, axis=0, keepdims=True)
    yc = y - mean
    var = jnp.mean(yc * yc, axis=0, keepdims=True)       # centered, two-pass
    y = yc * jax.lax.rsqrt(var + 1e-5)

    # ---- SkeletonPool (mean) + LeakyReLU(0.2) ----
    y = jnp.dot(y.astype(jnp.bfloat16), p1_ref[...],
                preferred_element_type=jnp.float32)
    y = jnp.where(y >= 0.0, y, 0.2 * y)

    # ---- layer 1: conv (k=3, stride=2, reflect pad=1) + bias, pool folded ----
    # Layer-0 output row groups ARE the even/odd planes layer 1 needs: z[2u] is
    # the "even" group, z[2u+1] the "odd" group -> contiguous taps again.
    z = y.astype(jnp.bfloat16).reshape(B, 2 * T2, LANE)  # single bf16 cast
    ze = z[:, :T2, :]                                    # z rows 0,2,4,...
    zo = z[:, T2:, :]                                    # z rows 1,3,5,...
    lhs2 = jnp.concatenate([shift1(zo, zo), ze, zo], axis=-1).reshape(B * T2, 3 * LANE)

    y2 = jnp.dot(lhs2, w2_ref[...], preferred_element_type=jnp.float32) + b2_ref[...]
    o_ref[...] = jax.nn.sigmoid(y2)


# ----------------------------------------------------------------------------
# Parameter construction (same mask/pool logic as the PyTorch module) + packing
# into the fused-kernel operand layout.
# ----------------------------------------------------------------------------
class Args:
    kernel_size = KSIZE
    num_layers = 2
    skeleton_dist = 1
    skeleton_pool = "mean"
    rotation = "quaternion"
    pos_repr = "3d"
    swap_dim = 1
    window_size = 1  # unused when swap_dim == 1


def build_params(args, topology, key):
    topologies = [topology]
    channel_base = [4]
    joint_num = [len(topology) + 1]
    for _ in range(args.num_layers):
        channel_base.append(channel_base[-1] * 2)

    layers = []
    for i in range(args.num_layers):
        neighbor_list = find_neighbor(topologies[i], args.skeleton_dist)
        in_channels = channel_base[i] * joint_num[i]
        out_channels = channel_base[i + 1] * joint_num[i]
        k = args.kernel_size
        has_bias = (i == args.num_layers - 1)   # module: bias only on last layer

        mask = build_skeleton_conv_mask(
            neighbor_list, in_channels, out_channels, joint_num[i], k)
        key, kw, kb = jax.random.split(key, 3)
        # TODO(synk): torch uses kaiming_uniform per masked slice; here a
        # deterministic uniform init (same shapes, same mask) is used instead.
        bound = 1.0 / math.sqrt(in_channels * k)
        weight = jax.random.uniform(
            kw, (out_channels, in_channels, k), minval=-bound, maxval=bound,
            dtype=jnp.float32) * jnp.asarray(mask)
        bias = (jax.random.uniform(kb, (out_channels,), minval=-bound, maxval=bound,
                                   dtype=jnp.float32) if has_bias else None)

        channels_per_edge = out_channels // len(neighbor_list)
        pool_w, new_edges = build_skeleton_pool(topologies[i], channels_per_edge)

        layers.append(dict(weight=weight, bias=bias, pool=jnp.asarray(pool_w)))
        topologies.append(new_edges)
        joint_num.append(len(new_edges) + 1)
    return layers


def pack_params(layers):
    """Fold / flatten / zero-pad the two layers' parameters for the fused kernel.

    Both conv weights are packed with the K taps stacked along the contraction
    dimension: (K*128, 128) so each layer is ONE 384-deep matmul.
    Layer 0 (conv -> BN -> pool -> LeakyReLU): the module's first conv has no
    bias.  Layer 1 (conv -> pool -> sigmoid): no nonlinearity between conv and
    pool, so the pool is folded into the conv weight/bias on the host.
    Matmul operands are stored in bf16; vector math stays f32 in the kernel.
    """
    assert len(layers) == 2, "fused kernel implements the 2-layer discriminator"
    l0, l1 = layers
    K = l0["weight"].shape[2]

    def pad2(a):
        return jnp.pad(a, ((0, LANE - a.shape[0]), (0, LANE - a.shape[1])))

    w1 = jnp.concatenate([pad2(l0["weight"][:, :, k].T) for k in range(K)], axis=0)
    p1 = pad2(l0["pool"].T)

    p2_t = l1["pool"].T                                   # (C_out_conv, C_out_pool)
    w2 = jnp.concatenate([pad2(l1["weight"][:, :, k].T @ p2_t) for k in range(K)],
                         axis=0)
    c_out = int(l1["pool"].shape[0])
    b2 = jnp.pad(l1["bias"] @ p2_t, (0, LANE - c_out)).reshape(1, LANE)

    return dict(
        w1=w1.astype(jnp.bfloat16),
        p1=p1.astype(jnp.bfloat16),
        w2=w2.astype(jnp.bfloat16),
        b2=b2.astype(jnp.float32),
        c_out=c_out,
    )


# ----------------------------------------------------------------------------
# Forward pass (mirrors BodyPartDiscriminator.forward, one pallas_call total)
# ----------------------------------------------------------------------------
def body_part_discriminator_forward(x, packed, kernel_size):
    # x: (B, C, T) NCL, as consumed by the PyTorch module (swap_dim == 1).
    # The torch forward appends one zero channel (quaternion config); zero-
    # padding the channel axis to the 128-lane width subsumes that concat.
    k = kernel_size
    pad = (k - 1) // 2
    assert k == KSIZE and pad == 1, "fused kernel is written for kernel_size == 3"
    B, C, T0 = x.shape
    assert T0 % 4 == 0 and T0 >= 4, "fused kernel assumes T divisible by 4"
    T1 = T0 // 2            # layer-0 output length
    T2 = T1 // 2            # layer-1 output length

    # De-interleave time mod 4 and go channels-last in one transpose; lane-pad
    # channels; cast activations to bf16 (reflect pads happen in-kernel).
    xq = x.reshape(B, C, T2, 4)
    xq = jnp.transpose(xq, (0, 3, 2, 1))                           # (B, 4, T2, C)
    xq = jnp.pad(xq, ((0, 0), (0, 0), (0, 0), (0, LANE - C)))
    xq = xq.astype(jnp.bfloat16)

    vmem = pl.BlockSpec(memory_space=pltpu.MemorySpace.VMEM)
    # TODO(synk): at much larger B*T, add a row-tile grid (>=512 rows/tile,
    # "parallel" axis for v7x's 2 TCs) with a two-pass BN-stat reduction and
    # bf16 double-buffered inputs; pointless at these tiny shapes, so the
    # kernel stays a single gridless program with everything in VMEM/registers.
    out = pl.pallas_call(
        _fused_discriminator_kernel,
        out_shape=jax.ShapeDtypeStruct((B * T2, LANE), jnp.float32),
        in_specs=[vmem] * 5,
        out_specs=vmem,
    )(xq, packed["w1"], packed["p1"], packed["w2"], packed["b2"])

    out = out.reshape(B, T2, LANE)[:, :, :packed["c_out"]]
    # torch does sigmoid(...).squeeze(); jnp.squeeze matches (drops B if B==1).
    return jnp.squeeze(jnp.transpose(out, (0, 2, 1)))              # (B, C_out, T2)


# ----------------------------------------------------------------------------
if __name__ == "__main__":
    args = Args()
    # Small tree skeleton: root (joint 0) with three 2-joint branches.
    topology = [[0, 1], [1, 2], [0, 3], [3, 4], [0, 5], [5, 6]]  # 6 edges, 7 joints

    key = jax.random.PRNGKey(0)
    key, kp, kx = jax.random.split(key, 3)
    layers = build_params(args, topology, kp)
    packed = pack_params(layers)

    # Input: (batch, 4*num_edges + 3, time) -- quaternion per edge + 3 root
    # channels; the forward pads one zero channel to reach 4 * joint_num.
    batch, time = 2, 16
    c_in = 4 * len(topology) + 3  # 27
    x = jax.random.normal(kx, (batch, c_in, time), dtype=jnp.float32)

    fwd = jax.jit(lambda xx: body_part_discriminator_forward(xx, packed, args.kernel_size))
    out = jax.block_until_ready(fwd(x))

    assert out.shape == (batch, 64, 4), out.shape
    assert bool(jnp.all((out >= 0.0) & (out <= 1.0)))
    print("KERNEL_OK")
</pallas_src>

<mosaic_0001>
module attributes {stable_mosaic.version = 11 : i64} {
  func.func @_fused_discriminator_kernel(%arg0: memref<2x4x4x128xbf16, #tpu.memory_space<vmem>>, %arg1: memref<384x128xbf16, #tpu.memory_space<vmem>>, %arg2: memref<128x128xbf16, #tpu.memory_space<vmem>>, %arg3: memref<384x128xbf16, #tpu.memory_space<vmem>>, %arg4: memref<1x128xf32, #tpu.memory_space<vmem>>, %arg5: memref<8x128xf32, #tpu.memory_space<vmem>>) attributes {dimension_semantics = [], scalar_prefetch = 0 : i64, scratch_operands = 0 : i64, tpu.core_type = #tpu.core_type<tc>} {
    %c0 = arith.constant 0 : index
    %c0_0 = arith.constant 0 : index
    %c0_1 = arith.constant 0 : index
    %c0_2 = arith.constant 0 : index
    %0 = vector.load %arg0[%c0, %c0_0, %c0_1, %c0_2] : memref<2x4x4x128xbf16, #tpu.memory_space<vmem>>, vector<2x4x4x128xbf16>
    %1 = vector.extract_strided_slice %0 {offsets = [0, 0, 0, 0], sizes = [2, 1, 4, 128], strides = [1, 1, 1, 1]} : vector<2x4x4x128xbf16> to vector<2x1x4x128xbf16>
    %2 = vector.shape_cast %1 : vector<2x1x4x128xbf16> to vector<2x4x128xbf16>
    %3 = vector.extract_strided_slice %0 {offsets = [0, 1, 0, 0], sizes = [2, 1, 4, 128], strides = [1, 1, 1, 1]} : vector<2x4x4x128xbf16> to vector<2x1x4x128xbf16>
    %4 = vector.shape_cast %3 : vector<2x1x4x128xbf16> to vector<2x4x128xbf16>
    %5 = vector.extract_strided_slice %0 {offsets = [0, 2, 0, 0], sizes = [2, 1, 4, 128], strides = [1, 1, 1, 1]} : vector<2x4x4x128xbf16> to vector<2x1x4x128xbf16>
    %6 = vector.shape_cast %5 : vector<2x1x4x128xbf16> to vector<2x4x128xbf16>
    %7 = vector.extract_strided_slice %0 {offsets = [0, 3, 0, 0], sizes = [2, 1, 4, 128], strides = [1, 1, 1, 1]} : vector<2x4x4x128xbf16> to vector<2x1x4x128xbf16>
    %8 = vector.shape_cast %7 : vector<2x1x4x128xbf16> to vector<2x4x128xbf16>
    %9 = vector.extract_strided_slice %4 {offsets = [0, 0, 0], sizes = [2, 1, 128], strides = [1, 1, 1]} : vector<2x4x128xbf16> to vector<2x1x128xbf16>
    %10 = vector.extract_strided_slice %8 {offsets = [0, 0, 0], sizes = [2, 3, 128], strides = [1, 1, 1]} : vector<2x4x128xbf16> to vector<2x3x128xbf16>
    %11 = tpu.concatenate %9, %10 in 1 : vector<2x1x128xbf16>, vector<2x3x128xbf16> -> vector<2x4x128xbf16>
    %12 = tpu.concatenate %11, %2, %4 in 2 : vector<2x4x128xbf16>, vector<2x4x128xbf16>, vector<2x4x128xbf16> -> vector<2x4x384xbf16>
    %13 = tpu.concatenate %4, %6, %8 in 2 : vector<2x4x128xbf16>, vector<2x4x128xbf16>, vector<2x4x128xbf16> -> vector<2x4x384xbf16>
    %14 = tpu.concatenate %12, %13 in 1 : vector<2x4x384xbf16>, vector<2x4x384xbf16> -> vector<2x8x384xbf16>
    %15 = vector.shape_cast %14 : vector<2x8x384xbf16> to vector<16x384xbf16>
    %c0_3 = arith.constant 0 : index
    %c0_4 = arith.constant 0 : index
    %16 = vector.load %arg1[%c0_3, %c0_4] : memref<384x128xbf16, #tpu.memory_space<vmem>>, vector<384x128xbf16>
    %cst = arith.constant dense<0.000000e+00> : vector<16x128xf32>
    %17 = tpu.matmul %15, %16, %cst {dimension_numbers = #tpu.dot_dimension_numbers<[1], [0], [0], [1], [0, 0, 1, 1], [], []>} : vector<16x384xbf16>, vector<384x128xbf16>, vector<16x128xf32> -> vector<16x128xf32>
    %cst_5 = arith.constant dense<0.000000e+00> : vector<128xf32>
    %18 = vector.multi_reduction <add>, %17, %cst_5 [0] : vector<16x128xf32> to vector<128xf32>
    %19 = vector.shape_cast %18 : vector<128xf32> to vector<1x128xf32>
    %cst_6 = arith.constant 1.600000e+01 : f32
    %20 = vector.broadcast %cst_6 : f32 to vector<1x128xf32>
    %21 = arith.divf %19, %20 : vector<1x128xf32>
    %22 = vector.broadcast %21 : vector<1x128xf32> to vector<16x128xf32>
    %23 = arith.subf %17, %22 : vector<16x128xf32>
    %24 = arith.mulf %23, %23 : vector<16x128xf32>
    %cst_7 = arith.constant dense<0.000000e+00> : vector<128xf32>
    %25 = vector.multi_reduction <add>, %24, %cst_7 [0] : vector<16x128xf32> to vector<128xf32>
    %26 = vector.shape_cast %25 : vector<128xf32> to vector<1x128xf32>
    %cst_8 = arith.constant 1.600000e+01 : f32
    %27 = vector.broadcast %cst_8 : f32 to vector<1x128xf32>
    %28 = arith.divf %26, %27 : vector<1x128xf32>
    %cst_9 = arith.constant 9.99999974E-6 : f32
    %29 = vector.broadcast %cst_9 : f32 to vector<1x128xf32>
    %30 = arith.addf %28, %29 : vector<1x128xf32>
    %31 = math.rsqrt %30 : vector<1x128xf32>
    %32 = vector.broadcast %31 : vector<1x128xf32> to vector<16x128xf32>
    %33 = arith.mulf %23, %32 : vector<16x128xf32>
    %34 = arith.truncf %33 : vector<16x128xf32> to vector<16x128xbf16>
    %c0_10 = arith.constant 0 : index
    %c0_11 = arith.constant 0 : index
    %35 = vector.load %arg2[%c0_10, %c0_11] : memref<128x128xbf16, #tpu.memory_space<vmem>>, vector<128x128xbf16>
    %cst_12 = arith.constant dense<0.000000e+00> : vector<16x128xf32>
    %36 = tpu.matmul %34, %35, %cst_12 {dimension_numbers = #tpu.dot_dimension_numbers<[1], [0], [0], [1], [0, 0, 1, 1], [], []>} : vector<16x128xbf16>, vector<128x128xbf16>, vector<16x128xf32> -> vector<16x128xf32>
    %cst_13 = arith.constant 0.000000e+00 : f32
    %37 = vector.broadcast %cst_13 : f32 to vector<16x128xf32>
    %38 = arith.cmpf oge, %36, %37 : vector<16x128xf32>
    %cst_14 = arith.constant 2.000000e-01 : f32
    %39 = vector.broadcast %cst_14 : f32 to vector<16x128xf32>
    %40 = arith.mulf %39, %36 : vector<16x128xf32>
    %41 = arith.select %38, %36, %40 : vector<16x128xi1>, vector<16x128xf32>
    %42 = arith.truncf %41 : vector<16x128xf32> to vector<16x128xbf16>
    %43 = vector.shape_cast %42 : vector<16x128xbf16> to vector<2x8x128xbf16>
    %44 = vector.extract_strided_slice %43 {offsets = [0, 0, 0], sizes = [2, 4, 128], strides = [1, 1, 1]} : vector<2x8x128xbf16> to vector<2x4x128xbf16>
    %45 = vector.extract_strided_slice %43 {offsets = [0, 4, 0], sizes = [2, 4, 128], strides = [1, 1, 1]} : vector<2x8x128xbf16> to vector<2x4x128xbf16>
    %46 = vector.extract_strided_slice %45 {offsets = [0, 0, 0], sizes = [2, 1, 128], strides = [1, 1, 1]} : vector<2x4x128xbf16> to vector<2x1x128xbf16>
    %47 = vector.extract_strided_slice %45 {offsets = [0, 0, 0], sizes = [2, 3, 128], strides = [1, 1, 1]} : vector<2x4x128xbf16> to vector<2x3x128xbf16>
    %48 = tpu.concatenate %46, %47 in 1 : vector<2x1x128xbf16>, vector<2x3x128xbf16> -> vector<2x4x128xbf16>
    %49 = tpu.concatenate %48, %44, %45 in 2 : vector<2x4x128xbf16>, vector<2x4x128xbf16>, vector<2x4x128xbf16> -> vector<2x4x384xbf16>
    %50 = vector.shape_cast %49 : vector<2x4x384xbf16> to vector<8x384xbf16>
    %c0_15 = arith.constant 0 : index
    %c0_16 = arith.constant 0 : index
    %51 = vector.load %arg3[%c0_15, %c0_16] : memref<384x128xbf16, #tpu.memory_space<vmem>>, vector<384x128xbf16>
    %cst_17 = arith.constant dense<0.000000e+00> : vector<8x128xf32>
    %52 = tpu.matmul %50, %51, %cst_17 {dimension_numbers = #tpu.dot_dimension_numbers<[1], [0], [0], [1], [0, 0, 1, 1], [], []>} : vector<8x384xbf16>, vector<384x128xbf16>, vector<8x128xf32> -> vector<8x128xf32>
    %c0_18 = arith.constant 0 : index
    %c0_19 = arith.constant 0 : index
    %53 = vector.load %arg4[%c0_18, %c0_19] : memref<1x128xf32, #tpu.memory_space<vmem>>, vector<1x128xf32>
    %54 = vector.broadcast %53 : vector<1x128xf32> to vector<8x128xf32>
    %55 = arith.addf %52, %54 : vector<8x128xf32>
    %56 = arith.negf %55 : vector<8x128xf32>
    %57 = math.exp %56 : vector<8x128xf32>
    %cst_20 = arith.constant 1.000000e+00 : f32
    %58 = vector.broadcast %cst_20 : f32 to vector<8x128xf32>
    %59 = arith.addf %58, %57 : vector<8x128xf32>
    %60 = arith.divf %58, %59 : vector<8x128xf32>
    %c0_21 = arith.constant 0 : index
    %c0_22 = arith.constant 0 : index
    %61 = vector.load %arg5[%c0_21, %c0_22] : memref<8x128xf32, #tpu.memory_space<vmem>>, vector<8x128xf32>
    tpu.vector_store %arg5[%c0_21, %c0_22], %60 {strides = array<i32>} : memref<8x128xf32, #tpu.memory_space<vmem>>, vector<8x128xf32>,
    return
  }
}

</mosaic_0001>

<llo_original>
// kernel: _lambda_.1
$region0: #{_lambda_.1}
  #allocation0 [shape = 'u32[]', space=smem, size = 0x4, offset = 0x4, fixed_abs, tag = 'smem constant byte address 0x4 - core index']
  #allocation1 [shape = 'u32[144,128]{1,0:T(1,128)}', space=vmem, size = 0x12000, scoped, tag = 'internal scratch']
  %s0 = inlined_call_operand.vmem [shape: bf16[2,4,4,128], index: 0, kind: input, shape index: {}]
  %s1 = inlined_call_operand.hbm [shape: bf16[384,128], index: 1, kind: input, shape index: {}]
  %s2 = inlined_call_operand.vmem [shape: bf16[128,128], index: 2, kind: input, shape index: {}]
  %s3 = inlined_call_operand.hbm [shape: bf16[384,128], index: 3, kind: input, shape index: {}]
  %s4 = inlined_call_operand.vmem [shape: f32[1,128], index: 4, kind: input, shape index: {}]
  %s5 = inlined_call_operand.vmem [shape: f32[8,128], index: 5, kind: output, shape index: {}]
  %s6 = sld [smem:[#allocation0]]
  $region38: #{_lambda_.1} parent=0
    _
  %s8 = ssub.s32 1, %s6
  %s9 = scalar_select 0, %s8, %s6
  $region1: #{_lambda_.1} parent=0
    #allocation2 [shape = 'u8[98304]{0}', space=vmem, size = 0x18000, scoped, tag = 'input window, operand 1, single buffered']
    #allocation3 [shape = 's32[1]{0}', space=sflag, size = 0x4, scoped, tag = 'scoped memory for _lambda_.1']
    #allocation4 [shape = 'u8[98304]{0}', space=vmem, size = 0x18000, scoped, tag = 'input window, operand 3, single buffered']
    #allocation5 [shape = 's32[1]{0}', space=sflag, size = 0x4, scoped, tag = 'scoped memory for _lambda_.1']
    %10 = vsyncpa [#allocation3], 0
    %11 = vsyncpa [#allocation5], 0
    // Predicated region
    $region2: #{_lambda_.1} parent=1 // pred_check
      _
    $region3: #{_lambda_.1} parent=1 // pred_check_branch
      %13 = sbr.rel (0) target = $region5
    $region4: #{_lambda_.1} parent=1 // pred_region
      _
    $region5: #{_lambda_.1} parent=1 // pred_fallthru
      _
    // Predicated region
    $region6: #{_lambda_.1} parent=1 // pred_check
      _
    $region7: #{_lambda_.1} parent=1 // pred_check_branch
      %15 = sbr.rel (0) target = $region9
    $region8: #{_lambda_.1} parent=1 // pred_region
      %s17 = ssub.s32 3072, 3072
      %18 = vsyncadd [#allocation3], %s17
      %s19 = sshll.u32 [#allocation2], 4
      %s20 = int_to_ptr.vmem [resolvable:$true] %s19
      %25 = dma.hbm_to_vmem [thread:$0]  %s1, 3072, %s20, [#allocation3], 64, 64, 4
    $region9: #{_lambda_.1} parent=1 // pred_fallthru
      _
    // Predicated region
    $region10: #{_lambda_.1} parent=1 // pred_check
      _
    $region11: #{_lambda_.1} parent=1 // pred_check_branch
      %27 = sbr.rel (0) target = $region13
    $region12: #{_lambda_.1} parent=1 // pred_region
      _
    $region13: #{_lambda_.1} parent=1 // pred_fallthru
      _
    // Predicated region
    $region14: #{_lambda_.1} parent=1 // pred_check
      _
    $region15: #{_lambda_.1} parent=1 // pred_check_branch
      %29 = sbr.rel (0) target = $region17
    $region16: #{_lambda_.1} parent=1 // pred_region
      %s31 = ssub.s32 3072, 3072
      %32 = vsyncadd [#allocation5], %s31
      %s33 = sshll.u32 [#allocation4], 4
      %s34 = int_to_ptr.vmem [resolvable:$true] %s33
      %39 = dma.hbm_to_vmem [thread:$0]  %s3, 3072, %s34, [#allocation5], 64, 64, 4
    $region17: #{_lambda_.1} parent=1 // pred_fallthru
      _
    // Predicated region
    $region18: #{_lambda_.1} parent=1 // pred_check
      _
    $region19: #{_lambda_.1} parent=1 // pred_check_branch
      %41 = sbr.rel (0) target = $region21
    $region20: #{_lambda_.1} parent=1 // pred_region
      _
    $region21: #{_lambda_.1} parent=1 // pred_fallthru
      _
    // Predicated region
    $region22: #{_lambda_.1} parent=1 // pred_check
      _
    $region23: #{_lambda_.1} parent=1 // pred_check_branch
      %43 = sbr.rel (0) target = $region25
    $region24: #{_lambda_.1} parent=1 // pred_region
      %44 = dma.done [#allocation3], 3072
    $region25: #{_lambda_.1} parent=1 // pred_fallthru
      _
    // Predicated region
    $region26: #{_lambda_.1} parent=1 // pred_check
      _
    $region27: #{_lambda_.1} parent=1 // pred_check_branch
      %46 = sbr.rel (0) target = $region29
    $region28: #{_lambda_.1} parent=1 // pred_region
      %47 = dma.done [#allocation5], 3072
    $region29: #{_lambda_.1} parent=1 // pred_fallthru
      _
    %v49 = vld [vmem:[%s0] sm:$0x3]
    %v50 = vld [vmem:[%s0 + $0x2] sm:$0x3]
    %v51 = vld [vmem:[%s0 + $0x4] sm:$0x3]
    %v52 = vld [vmem:[%s0 + $0x6] sm:$0x3]
    %v53 = vld [vmem:[%s0 + $0x8] sm:$0x3]
    %v54 = vld [vmem:[%s0 + $0xa] sm:$0x3]
    %v55 = vld [vmem:[%s0 + $0xc] sm:$0x3]
    %v56 = vld [vmem:[%s0 + $0xe] sm:$0x3]
    %v60 = vunpack.c.l.s4 1983009808
    %v61 = vunpack.c.0.s8 %v60
    %v62 = vlaneseq
    %v63 = vshrl.u32 %v62, 7
    %v64 = vsub.s32 %v61, %v63
    %v65 = vrot.slane %v52, %v64
    %v67 = vunpack.c.l.s4 1983009808
    %v68 = vunpack.c.0.s8 %v67
    %v69 = vlaneseq
    %v70 = vshrl.u32 %v69, 7
    %v71 = vsub.s32 %v68, %v70
    %v72 = vrot.slane %v56, %v71
    %v74 = vshrl.u32 %v65, 16
    %v76 = vrot.slane %v74, 7
    %v77 = vshll.u32 %v65, 16
    %v79 = vor.u32 %v76, %v77
    %v81 = vshrl.u32 %v72, 16
    %v83 = vrot.slane %v81, 7
    %v84 = vshll.u32 %v72, 16
    %v86 = vor.u32 %v83, %v84
    %vm89 = vcmask 1040384
    %vm90 = vsmask.f32 256
    %vm91 = vmand %vm89, %vm90
    %v92 = vsel %vm91, %v50, %v79
    %v93 = vsel %vm91, %v54, %v86
    %v98 = vrot.slane %v50, 6
    %v99 = vrot.slane %v51, 6
    %v100 = vrot.slane %v52, 6
    %v101 = vrot.slane %v54, 6
    %v102 = vrot.slane %v55, 6
    %v103 = vrot.slane %v56, 6
    %vm104 = vcmask 1041408
    %v107 = vsel %vm104, %v92, %v98
    %v110 = vsel %vm104, %v49, %v99
    %v113 = vsel %vm104, %v50, %v100
    %v116 = vsel %vm104, %v93, %v101
    %v119 = vsel %vm104, %v53, %v102
    %v122 = vsel %vm104, %v54, %v103
    %v129 = vunpack.c.l.b16 %v107
    %v130 = vunpack.c.l.b16 %v110
    %v131 = vunpack.c.l.b16 %v113
    %v132 = vunpack.c.l.b16 %v116
    %v133 = vunpack.c.l.b16 %v119
    %v134 = vunpack.c.l.b16 %v122
    %v135 = vld [vmem:[#allocation2] sm:$0xf]
    %v136 = vld [vmem:[#allocation2 + $0x4] sm:$0xf]
    %v137 = vld [vmem:[#allocation2 + $0x8] sm:$0xf]
    %v138 = vld [vmem:[#allocation2 + $0xc] sm:$0xf]
    %v139 = vld [vmem:[#allocation2 + $0x10] sm:$0xf]
    %v140 = vld [vmem:[#allocation2 + $0x14] sm:$0xf]
    %v141 = vld [vmem:[#allocation2 + $0x18] sm:$0xf]
    %v142 = vld [vmem:[#allocation2 + $0x1c] sm:$0xf]
    %v143 = vld [vmem:[#allocation2 + $0x20] sm:$0xf]
    %v144 = vld [vmem:[#allocation2 + $0x24] sm:$0xf]
    %v145 = vld [vmem:[#allocation2 + $0x28] sm:$0xf]
    %v146 = vld [vmem:[#allocation2 + $0x2c] sm:$0xf]
    %v147 = vld [vmem:[#allocation2 + $0x30] sm:$0xf]
    %v148 = vld [vmem:[#allocation2 + $0x34] sm:$0xf]
    %v149 = vld [vmem:[#allocation2 + $0x38] sm:$0xf]
    %v150 = vld [vmem:[#allocation2 + $0x3c] sm:$0xf]
    %v151 = vld [vmem:[#allocation2 + $0x40] sm:$0xf]
    %v152 = vld [vmem:[#allocation2 + $0x44] sm:$0xf]
    %v153 = vld [vmem:[#allocation2 + $0x48] sm:$0xf]
    %v154 = vld [vmem:[#allocation2 + $0x4c] sm:$0xf]
    %v155 = vld [vmem:[#allocation2 + $0x50] sm:$0xf]
    %v156 = vld [vmem:[#allocation2 + $0x54] sm:$0xf]
    %v157 = vld [vmem:[#allocation2 + $0x58] sm:$0xf]
    %v158 = vld [vmem:[#allocation2 + $0x5c] sm:$0xf]
    %v159 = vld [vmem:[#allocation2 + $0x60] sm:$0xf]
    %v160 = vld [vmem:[#allocation2 + $0x64] sm:$0xf]
    %v161 = vld [vmem:[#allocation2 + $0x68] sm:$0xf]
    %v162 = vld [vmem:[#allocation2 + $0x6c] sm:$0xf]
    %v163 = vld [vmem:[#allocation2 + $0x70] sm:$0xf]
    %v164 = vld [vmem:[#allocation2 + $0x74] sm:$0xf]
    %v165 = vld [vmem:[#allocation2 + $0x78] sm:$0xf]
    %v166 = vld [vmem:[#allocation2 + $0x7c] sm:$0xf]
    %v167 = vld [vmem:[#allocation2 + $0x80] sm:$0xf]
    %v168 = vld [vmem:[#allocation2 + $0x84] sm:$0xf]
    %v169 = vld [vmem:[#allocation2 + $0x88] sm:$0xf]
    %v170 = vld [vmem:[#allocation2 + $0x8c] sm:$0xf]
    %v171 = vld [vmem:[#allocation2 + $0x90] sm:$0xf]
    %v172 = vld [vmem:[#allocation2 + $0x94] sm:$0xf]
    %v173 = vld [vmem:[#allocation2 + $0x98] sm:$0xf]
    %v174 = vld [vmem:[#allocation2 + $0x9c] sm:$0xf]
    %v175 = vld [vmem:[#allocation2 + $0xa0] sm:$0xf]
    %v176 = vld [vmem:[#allocation2 + $0xa4] sm:$0xf]
    %v177 = vld [vmem:[#allocation2 + $0xa8] sm:$0xf]
    %v178 = vld [vmem:[#allocation2 + $0xac] sm:$0xf]
    %v179 = vld [vmem:[#allocation2 + $0xb0] sm:$0xf]
    %v180 = vld [vmem:[#allocation2 + $0xb4] sm:$0xf]
    %v181 = vld [vmem:[#allocation2 + $0xb8] sm:$0xf]
    %v182 = vld [vmem:[#allocation2 + $0xbc] sm:$0xf]
    %v183 = vpack.c.b16 %v132, %v129
    %v184 = vpack.c.b16 %v133, %v130
    %v185 = vpack.c.b16 %v134, %v131
    %v237 = vunpack.c.l.b16 %v135
    %v238 = vunpack.c.l.b16 %v136
    %v239 = vunpack.c.l.b16 %v137
    %v240 = vunpack.c.l.b16 %v138
    %v241 = vunpack.c.l.b16 %v139
    %v242 = vunpack.c.l.b16 %v140
    %v243 = vunpack.c.l.b16 %v141
    %v244 = vunpack.c.l.b16 %v142
    %v245 = vunpack.c.l.b16 %v143
    %v246 = vunpack.c.l.b16 %v144
    %v247 = vunpack.c.l.b16 %v145
    %v248 = vunpack.c.l.b16 %v146
    %v249 = vunpack.c.l.b16 %v147
    %v250 = vunpack.c.l.b16 %v148
    %v251 = vunpack.c.l.b16 %v149
    %v252 = vunpack.c.l.b16 %v150
    %v253 = vunpack.c.l.b16 %v151
    %v254 = vunpack.c.l.b16 %v152
    %v255 = vunpack.c.l.b16 %v153
    %v256 = vunpack.c.l.b16 %v154
    %v257 = vunpack.c.l.b16 %v155
    %v258 = vunpack.c.l.b16 %v156
    %v259 = vunpack.c.l.b16 %v157
    %v260 = vunpack.c.l.b16 %v158
    %v261 = vunpack.c.l.b16 %v159
    %v262 = vunpack.c.l.b16 %v160
    %v263 = vunpack.c.l.b16 %v161
    %v264 = vunpack.c.l.b16 %v162
    %v265 = vunpack.c.l.b16 %v163
    %v266 = vunpack.c.l.b16 %v164
    %v267 = vunpack.c.l.b16 %v165
    %v268 = vunpack.c.l.b16 %v166
    %v269 = vunpack.c.l.b16 %v167
    %v270 = vunpack.c.l.b16 %v168
    %v271 = vunpack.c.l.b16 %v169
    %v272 = vunpack.c.l.b16 %v170
    %v273 = vunpack.c.l.b16 %v171
    %v274 = vunpack.c.l.b16 %v172
    %v275 = vunpack.c.l.b16 %v173
    %v276 = vunpack.c.l.b16 %v174
    %v277 = vunpack.c.l.b16 %v175
    %v278 = vunpack.c.l.b16 %v176
    %v279 = vunpack.c.l.b16 %v177
    %v280 = vunpack.c.l.b16 %v178
    %v281 = vunpack.c.l.b16 %v179
    %v282 = vunpack.c.l.b16 %v180
    %v283 = vunpack.c.l.b16 %v181
    %v284 = vunpack.c.l.b16 %v182
    %v285 = vpack.c.b16 %v238, %v237
    %v286 = vpack.c.b16 %v240, %v239
    %v287 = vpack.c.b16 %v242, %v241
    %v288 = vpack.c.b16 %v244, %v243
    %v289 = vpack.c.b16 %v246, %v245
    %v290 = vpack.c.b16 %v248, %v247
    %v291 = vpack.c.b16 %v250, %v249
    %v292 = vpack.c.b16 %v252, %v251
    %v293 = vpack.c.b16 %v254, %v253
    %v294 = vpack.c.b16 %v256, %v255
    %v295 = vpack.c.b16 %v258, %v257
    %v296 = vpack.c.b16 %v260, %v259
    %v297 = vpack.c.b16 %v262, %v261
    %v298 = vpack.c.b16 %v264, %v263
    %v299 = vpack.c.b16 %v266, %v265
    %v300 = vpack.c.b16 %v268, %v267
    %v301 = vpack.c.b16 %v270, %v269
    %v302 = vpack.c.b16 %v272, %v271
    %v303 = vpack.c.b16 %v274, %v273
    %v304 = vpack.c.b16 %v276, %v275
    %v305 = vpack.c.b16 %v278, %v277
    %v306 = vpack.c.b16 %v280, %v279
    %v307 = vpack.c.b16 %v282, %v281
    %v308 = vpack.c.b16 %v284, %v283
    %333 = vmatprep.subr.bf16.mxu0 0
    %334 = vmatpush1.bf16.msra.mxu0 %v292
    %335 = vmatprep.subr.bf16.mxu0 0
    %336 = vmatpush1.bf16.msra.mxu0 %v291
    %337 = vmatprep.subr.bf16.mxu0 0
    %338 = vmatpush1.bf16.msra.mxu0 %v290
    %339 = vmatprep.subr.bf16.mxu0 0
    %340 = vmatpush1.bf16.msra.mxu0 %v289
    %341 = vmatprep.subr.bf16.mxu0 0
    %342 = vmatpush1.bf16.msra.mxu0 %v288
    %343 = vmatprep.subr.bf16.mxu0 0
    %344 = vmatpush1.bf16.msra.mxu0 %v287
    %345 = vmatprep.subr.bf16.mxu0 0
    %346 = vmatpush1.bf16.msra.mxu0 %v286
    %347 = vmatprep.subr.bf16.mxu0 0
    %348 = vmatpush1.bf16.msra.mxu0 %v285
    %349 = vmatprep.subr.bf16.mxu0 0
    %350 = vmatpush2.bf16.msra.mxu0 %v300
    %351 = vmatprep.subr.bf16.mxu0 0
    %352 = vmatpush2.bf16.msra.mxu0 %v299
    %353 = vmatprep.subr.bf16.mxu0 0
    %354 = vmatpush2.bf16.msra.mxu0 %v298
    %355 = vmatprep.subr.bf16.mxu0 0
    %356 = vmatpush2.bf16.msra.mxu0 %v297
    %357 = vmatprep.subr.bf16.mxu0 0
    %358 = vmatpush2.bf16.msra.mxu0 %v296
    %359 = vmatprep.subr.bf16.mxu0 0
    %360 = vmatpush2.bf16.msra.mxu0 %v295
    %361 = vmatprep.subr.bf16.mxu0 0
    %362 = vmatpush2.bf16.msra.mxu0 %v294
    %363 = vmatprep.subr.bf16.mxu0 0
    %364 = vmatpush2.bf16.msra.mxu0 %v293
    %365 = vmatprep.mubr.bf16.mxu0 %v184
    %366 = vmatmul.mubr.bf16.gmra.mxu0 %v183
    %v367 = vpop.f32.mrf.mxu0
    %v368 = vadd.f32 0.0, %v367
    %v369 = vpop.f32.mrf.mxu0
    %v370 = vpop.f32.mrf.mxu0
    %v371 = vadd.f32 0.0, %v370
    %v372 = vpop.f32.mrf.mxu0
    %373 = vdwg.mxu0
    %374 = vmatprep.subr.bf16.mxu0 0
    %375 = vmatpush1.bf16.msra.mxu0 %v308
    %376 = vmatprep.subr.bf16.mxu0 0
    %377 = vmatpush1.bf16.msra.mxu0 %v307
    %378 = vmatprep.subr.bf16.mxu0 0
    %379 = vmatpush1.bf16.msra.mxu0 %v306
    %380 = vmatprep.subr.bf16.mxu0 0
    %381 = vmatpush1.bf16.msra.mxu0 %v305
    %382 = vmatprep.subr.bf16.mxu0 0
    %383 = vmatpush1.bf16.msra.mxu0 %v304
    %384 = vmatprep.subr.bf16.mxu0 0
    %385 = vmatpush1.bf16.msra.mxu0 %v303
    %386 = vmatprep.subr.bf16.mxu0 0
    %387 = vmatpush1.bf16.msra.mxu0 %v302
    %388 = vmatprep.subr.bf16.mxu0 0
    %389 = vmatpush1.bf16.msra.mxu0 %v301
    %390 = vmatprep.subr.bf16.mxu0 0
    %391 = vmatpush2.bf16.msra.mxu0 0
    %392 = vmatprep.subr.bf16.mxu0 0
    %393 = vmatpush2.bf16.msra.mxu0 0
    %394 = vmatprep.subr.bf16.mxu0 0
    %395 = vmatpush2.bf16.msra.mxu0 0
    %396 = vmatprep.subr.bf16.mxu0 0
    %397 = vmatpush2.bf16.msra.mxu0 0
    %398 = vmatprep.subr.bf16.mxu0 0
    %399 = vmatpush2.bf16.msra.mxu0 0
    %400 = vmatprep.subr.bf16.mxu0 0
    %401 = vmatpush2.bf16.msra.mxu0 0
    %402 = vmatprep.subr.bf16.mxu0 0
    %403 = vmatpush2.bf16.msra.mxu0 0
    %404 = vmatprep.subr.bf16.mxu0 0
    %405 = vmatpush2.bf16.msra.mxu0 0
    %406 = vmatprep.mubr.bf16.mxu0 0
    %407 = vmatmul.mubr.bf16.gmra.mxu0 %v185
    %v408 = vpop.f32.mrf.mxu0
    %v409 = vadd.f32 %v368, %v408
    %v410 = vpop.f32.mrf.mxu0
    %v411 = vpop.f32.mrf.mxu0
    %v412 = vadd.f32 %v371, %v411
    %v413 = vpop.f32.mrf.mxu0
    %414 = vdwg.mxu0
    %v415 = vadd.f32 %v409, %v412
    %v416 = vrot.slane %v415, 4
    %v417 = vadd.f32 %v415, %v416
    %v418 = vrot.slane %v417, 2
    %v419 = vadd.f32 %v417, %v418
    %v420 = vrot.slane %v419, 1
    %v421 = vadd.f32 %v419, %v420
    %v422 = vrcp.pop 16.0
    %v423 = vmul.f32 %v421, %v422
    %v424 = vsub.f32 %v409, %v423
    %v425 = vsub.f32 %v412, %v423
    %v426 = vmul.f32 %v424, %v424
    %v427 = vmul.f32 %v425, %v425
    %v428 = vadd.f32 %v426, %v427
    %v429 = vrot.slane %v428, 4
    %v430 = vadd.f32 %v428, %v429
    %v431 = vrot.slane %v430, 2
    %v432 = vadd.f32 %v430, %v431
    %v433 = vrot.slane %v432, 1
    %v434 = vadd.f32 %v432, %v433
    %v435 = vmul.f32 %v434, %v422
    %v436 = vadd.f32 %v435, 1e-05
    %v437 = vrsqrt.pop %v436
    %v438 = vmul.f32 %v424, %v437
    %v439 = vmul.f32 %v425, %v437
    %v440 = vpack.c.bf16 %v439, %v438
    %v441 = vld [vmem:[%s2] sm:$0xf]
    %v442 = vld [vmem:[%s2 + $0x4] sm:$0xf]
    %v443 = vld [vmem:[%s2 + $0x8] sm:$0xf]
    %v444 = vld [vmem:[%s2 + $0xc] sm:$0xf]
    %v445 = vld [vmem:[%s2 + $0x10] sm:$0xf]
    %v446 = vld [vmem:[%s2 + $0x14] sm:$0xf]
    %v447 = vld [vmem:[%s2 + $0x18] sm:$0xf]
    %v448 = vld [vmem:[%s2 + $0x1c] sm:$0xf]
    %v449 = vld [vmem:[%s2 + $0x20] sm:$0xf]
    %v450 = vld [vmem:[%s2 + $0x24] sm:$0xf]
    %v451 = vld [vmem:[%s2 + $0x28] sm:$0xf]
    %v452 = vld [vmem:[%s2 + $0x2c] sm:$0xf]
    %v453 = vld [vmem:[%s2 + $0x30] sm:$0xf]
    %v454 = vld [vmem:[%s2 + $0x34] sm:$0xf]
    %v455 = vld [vmem:[%s2 + $0x38] sm:$0xf]
    %v456 = vld [vmem:[%s2 + $0x3c] sm:$0xf]
    %v473 = vunpack.c.l.b16 %v441
    %v474 = vunpack.c.l.b16 %v442
    %v475 = vunpack.c.l.b16 %v443
    %v476 = vunpack.c.l.b16 %v444
    %v477 = vunpack.c.l.b16 %v445
    %v478 = vunpack.c.l.b16 %v446
    %v479 = vunpack.c.l.b16 %v447
    %v480 = vunpack.c.l.b16 %v448
    %v481 = vunpack.c.l.b16 %v449
    %v482 = vunpack.c.l.b16 %v450
    %v483 = vunpack.c.l.b16 %v451
    %v484 = vunpack.c.l.b16 %v452
    %v485 = vunpack.c.l.b16 %v453
    %v486 = vunpack.c.l.b16 %v454
    %v487 = vunpack.c.l.b16 %v455
    %v488 = vunpack.c.l.b16 %v456
    %v489 = vpack.c.b16 %v474, %v473
    %v490 = vpack.c.b16 %v476, %v475
    %v491 = vpack.c.b16 %v478, %v477
    %v492 = vpack.c.b16 %v480, %v479
    %v493 = vpack.c.b16 %v482, %v481
    %v494 = vpack.c.b16 %v484, %v483
    %v495 = vpack.c.b16 %v486, %v485
    %v496 = vpack.c.b16 %v488, %v487
    %505 = vmatprep.subr.bf16.mxu0 0
    %506 = vmatpush1.bf16.msra.mxu0 %v496
    %507 = vmatprep.subr.bf16.mxu0 0
    %508 = vmatpush1.bf16.msra.mxu0 %v495
    %509 = vmatprep.subr.bf16.mxu0 0
    %510 = vmatpush1.bf16.msra.mxu0 %v494
    %511 = vmatprep.subr.bf16.mxu0 0
    %512 = vmatpush1.bf16.msra.mxu0 %v493
    %513 = vmatprep.subr.bf16.mxu0 0
    %514 = vmatpush1.bf16.msra.mxu0 %v492
    %515 = vmatprep.subr.bf16.mxu0 0
    %516 = vmatpush1.bf16.msra.mxu0 %v491
    %517 = vmatprep.subr.bf16.mxu0 0
    %518 = vmatpush1.bf16.msra.mxu0 %v490
    %519 = vmatprep.subr.bf16.mxu0 0
    %520 = vmatpush1.bf16.msra.mxu0 %v489
    %521 = vmatprep.subr.bf16.mxu0 0
    %522 = vmatpush2.bf16.msra.mxu0 0
    %523 = vmatprep.subr.bf16.mxu0 0
    %524 = vmatpush2.bf16.msra.mxu0 0
    %525 = vmatprep.subr.bf16.mxu0 0
    %526 = vmatpush2.bf16.msra.mxu0 0
    %527 = vmatprep.subr.bf16.mxu0 0
    %528 = vmatpush2.bf16.msra.mxu0 0
    %529 = vmatprep.subr.bf16.mxu0 0
    %530 = vmatpush2.bf16.msra.mxu0 0
    %531 = vmatprep.subr.bf16.mxu0 0
    %532 = vmatpush2.bf16.msra.mxu0 0
    %533 = vmatprep.subr.bf16.mxu0 0
    %534 = vmatpush2.bf16.msra.mxu0 0
    %535 = vmatprep.subr.bf16.mxu0 0
    %536 = vmatpush2.bf16.msra.mxu0 0
    %537 = vmatprep.mubr.bf16.mxu0 0
    %538 = vmatmul.mubr.bf16.gmra.mxu0 %v440
    %v539 = vpop.f32.mrf.mxu0
    %v540 = vadd.f32 0.0, %v539
    %v541 = vpop.f32.mrf.mxu0
    %v542 = vpop.f32.mrf.mxu0
    %v543 = vadd.f32 0.0, %v542
    %v544 = vpop.f32.mrf.mxu0
    %545 = vdwg.mxu0
    %vm546 = vcmp.ge.f32.partialorder %v540, 0.0
    %vm547 = vcmp.ge.f32.partialorder %v543, 0.0
    %v548 = vmul.f32 %v540, 0.2
    %v549 = vmul.f32 %v543, 0.2
    %v550 = vsel %vm546, %v540, %v548
    %v551 = vsel %vm547, %v543, %v549
    %v552 = vpack.c.bf16 %v551, %v550
    %v554 = vunpack.c.l.b16 %v552
    %v555 = vunpack.c.h.b16 %v552
    %v556 = vpack.c.b16 %v554, %v554
    %v557 = vpack.c.b16 %v555, %v555
    %v558 = vrot.slane %v556, 2
    %v559 = vrot.slane %v557, 2
    %v563 = vshrl.u32 %v556, 16
    %v565 = vrot.slane %v563, 1
    %v566 = vshll.u32 %v556, 16
    %v568 = vrot.slane %v566, 2
    %v569 = vor.u32 %v565, %v568
    %v571 = vshrl.u32 %v557, 16
    %v573 = vrot.slane %v571, 1
    %v574 = vshll.u32 %v557, 16
    %v576 = vrot.slane %v574, 2
    %v577 = vor.u32 %v573, %v576
    %v580 = vsel %vm91, %v558, %v569
    %v581 = vsel %vm91, %v559, %v577
    %v584 = vcombine.low %v580, %v556
    %v586 = vunpack.c.l.s4 1983009808
    %v587 = vunpack.c.0.s8 %v586
    %v588 = vlaneseq
    %v589 = vshrl.u32 %v588, 7
    %v590 = vsub.s32 %v587, %v589
    %v591 = vrot.slane %v584, %v590
    %v593 = vunpack.c.l.s4 1983009808
    %v594 = vunpack.c.0.s8 %v593
    %v595 = vlaneseq
    %v596 = vshrl.u32 %v595, 7
    %v597 = vsub.s32 %v594, %v596
    %v598 = vrot.slane %v558, %v597
    %v599 = vcombine.low %v591, %v598
    %v600 = vcombine.low %v581, %v557
    %v602 = vunpack.c.l.s4 1983009808
    %v603 = vunpack.c.0.s8 %v602
    %v604 = vlaneseq
    %v605 = vshrl.u32 %v604, 7
    %v606 = vsub.s32 %v603, %v605
    %v607 = vrot.slane %v600, %v606
    %v609 = vunpack.c.l.s4 1983009808
    %v610 = vunpack.c.0.s8 %v609
    %v611 = vlaneseq
    %v612 = vshrl.u32 %v611, 7
    %v613 = vsub.s32 %v610, %v612
    %v614 = vrot.slane %v559, %v613
    %v615 = vcombine.low %v607, %v614
    %v616 = vld [vmem:[#allocation4] sm:$0xf]
    %v617 = vld [vmem:[#allocation4 + $0x4] sm:$0xf]
    %v618 = vld [vmem:[#allocation4 + $0x8] sm:$0xf]
    %v619 = vld [vmem:[#allocation4 + $0xc] sm:$0xf]
    %v620 = vld [vmem:[#allocation4 + $0x10] sm:$0xf]
    %v621 = vld [vmem:[#allocation4 + $0x14] sm:$0xf]
    %v622 = vld [vmem:[#allocation4 + $0x18] sm:$0xf]
    %v623 = vld [vmem:[#allocation4 + $0x1c] sm:$0xf]
    %v624 = vld [vmem:[#allocation4 + $0x20] sm:$0xf]
    %v625 = vld [vmem:[#allocation4 + $0x24] sm:$0xf]
    %v626 = vld [vmem:[#allocation4 + $0x28] sm:$0xf]
    %v627 = vld [vmem:[#allocation4 + $0x2c] sm:$0xf]
    %v628 = vld [vmem:[#allocation4 + $0x30] sm:$0xf]
    %v629 = vld [vmem:[#allocation4 + $0x34] sm:$0xf]
    %v630 = vld [vmem:[#allocation4 + $0x38] sm:$0xf]
    %v631 = vld [vmem:[#allocation4 + $0x3c] sm:$0xf]
    %v632 = vld [vmem:[#allocation4 + $0x40] sm:$0xf]
    %v633 = vld [vmem:[#allocation4 + $0x44] sm:$0xf]
    %v634 = vld [vmem:[#allocation4 + $0x48] sm:$0xf]
    %v635 = vld [vmem:[#allocation4 + $0x4c] sm:$0xf]
    %v636 = vld [vmem:[#allocation4 + $0x50] sm:$0xf]
    %v637 = vld [vmem:[#allocation4 + $0x54] sm:$0xf]
    %v638 = vld [vmem:[#allocation4 + $0x58] sm:$0xf]
    %v639 = vld [vmem:[#allocation4 + $0x5c] sm:$0xf]
    %v640 = vld [vmem:[#allocation4 + $0x60] sm:$0xf]
    %v641 = vld [vmem:[#allocation4 + $0x64] sm:$0xf]
    %v642 = vld [vmem:[#allocation4 + $0x68] sm:$0xf]
    %v643 = vld [vmem:[#allocation4 + $0x6c] sm:$0xf]
    %v644 = vld [vmem:[#allocation4 + $0x70] sm:$0xf]
    %v645 = vld [vmem:[#allocation4 + $0x74] sm:$0xf]
    %v646 = vld [vmem:[#allocation4 + $0x78] sm:$0xf]
    %v647 = vld [vmem:[#allocation4 + $0x7c] sm:$0xf]
    %v648 = vld [vmem:[#allocation4 + $0x80] sm:$0xf]
    %v649 = vld [vmem:[#allocation4 + $0x84] sm:$0xf]
    %v650 = vld [vmem:[#allocation4 + $0x88] sm:$0xf]
    %v651 = vld [vmem:[#allocation4 + $0x8c] sm:$0xf]
    %v652 = vld [vmem:[#allocation4 + $0x90] sm:$0xf]
    %v653 = vld [vmem:[#allocation4 + $0x94] sm:$0xf]
    %v654 = vld [vmem:[#allocation4 + $0x98] sm:$0xf]
    %v655 = vld [vmem:[#allocation4 + $0x9c] sm:$0xf]
    %v656 = vld [vmem:[#allocation4 + $0xa0] sm:$0xf]
    %v657 = vld [vmem:[#allocation4 + $0xa4] sm:$0xf]
    %v658 = vld [vmem:[#allocation4 + $0xa8] sm:$0xf]
    %v659 = vld [vmem:[#allocation4 + $0xac] sm:$0xf]
    %v660 = vld [vmem:[#allocation4 + $0xb0] sm:$0xf]
    %v661 = vld [vmem:[#allocation4 + $0xb4] sm:$0xf]
    %v662 = vld [vmem:[#allocation4 + $0xb8] sm:$0xf]
    %v663 = vld [vmem:[#allocation4 + $0xbc] sm:$0xf]
    %v664 = vld [vmem:[%s4] sm:$0x1]
    %v666 = vlaneseq
    %v667 = vshrl.u32 %v666, 7
    %v668 = vsub.s32 0, %v667
    %v669 = vrot.slane %v664, %v668
    %v671 = vcombine.low %v599, %v615
    %v672 = vcombine.high %v599, %v615
    %v674 = vunpack.c.l.s4 1983009808
    %v675 = vunpack.c.0.s8 %v674
    %v676 = vlaneseq
    %v677 = vshrl.u32 %v676, 7
    %v678 = vsub.s32 %v675, %v677
    %v679 = vrot.slane %v671, %v678
    %v681 = vunpack.c.l.s4 1983009808
    %v682 = vunpack.c.0.s8 %v681
    %v683 = vlaneseq
    %v684 = vshrl.u32 %v683, 7
    %v685 = vsub.s32 %v682, %v684
    %v686 = vrot.slane %v672, %v685
    %v687 = vcombine.high %v679, %v679
    %v739 = vunpack.c.l.b16 %v616
    %v740 = vunpack.c.l.b16 %v617
    %v741 = vunpack.c.l.b16 %v618
    %v742 = vunpack.c.l.b16 %v619
    %v743 = vunpack.c.l.b16 %v620
    %v744 = vunpack.c.l.b16 %v621
    %v745 = vunpack.c.l.b16 %v622
    %v746 = vunpack.c.l.b16 %v623
    %v747 = vunpack.c.l.b16 %v624
    %v748 = vunpack.c.l.b16 %v625
    %v749 = vunpack.c.l.b16 %v626
    %v750 = vunpack.c.l.b16 %v627
    %v751 = vunpack.c.l.b16 %v628
    %v752 = vunpack.c.l.b16 %v629
    %v753 = vunpack.c.l.b16 %v630
    %v754 = vunpack.c.l.b16 %v631
    %v755 = vunpack.c.l.b16 %v632
    %v756 = vunpack.c.l.b16 %v633
    %v757 = vunpack.c.l.b16 %v634
    %v758 = vunpack.c.l.b16 %v635
    %v759 = vunpack.c.l.b16 %v636
    %v760 = vunpack.c.l.b16 %v637
    %v761 = vunpack.c.l.b16 %v638
    %v762 = vunpack.c.l.b16 %v639
    %v763 = vunpack.c.l.b16 %v640
    %v764 = vunpack.c.l.b16 %v641
    %v765 = vunpack.c.l.b16 %v642
    %v766 = vunpack.c.l.b16 %v643
    %v767 = vunpack.c.l.b16 %v644
    %v768 = vunpack.c.l.b16 %v645
    %v769 = vunpack.c.l.b16 %v646
    %v770 = vunpack.c.l.b16 %v647
    %v771 = vunpack.c.l.b16 %v648
    %v772 = vunpack.c.l.b16 %v649
    %v773 = vunpack.c.l.b16 %v650
    %v774 = vunpack.c.l.b16 %v651
    %v775 = vunpack.c.l.b16 %v652
    %v776 = vunpack.c.l.b16 %v653
    %v777 = vunpack.c.l.b16 %v654
    %v778 = vunpack.c.l.b16 %v655
    %v779 = vunpack.c.l.b16 %v656
    %v780 = vunpack.c.l.b16 %v657
    %v781 = vunpack.c.l.b16 %v658
    %v782 = vunpack.c.l.b16 %v659
    %v783 = vunpack.c.l.b16 %v660
    %v784 = vunpack.c.l.b16 %v661
    %v785 = vunpack.c.l.b16 %v662
    %v786 = vunpack.c.l.b16 %v663
    %v787 = vpack.c.b16 %v740, %v739
    %v788 = vpack.c.b16 %v742, %v741
    %v789 = vpack.c.b16 %v744, %v743
    %v790 = vpack.c.b16 %v746, %v745
    %v791 = vpack.c.b16 %v748, %v747
    %v792 = vpack.c.b16 %v750, %v749
    %v793 = vpack.c.b16 %v752, %v751
    %v794 = vpack.c.b16 %v754, %v753
    %v795 = vpack.c.b16 %v756, %v755
    %v796 = vpack.c.b16 %v758, %v757
    %v797 = vpack.c.b16 %v760, %v759
    %v798 = vpack.c.b16 %v762, %v761
    %v799 = vpack.c.b16 %v764, %v763
    %v800 = vpack.c.b16 %v766, %v765
    %v801 = vpack.c.b16 %v768, %v767
    %v802 = vpack.c.b16 %v770, %v769
    %v803 = vpack.c.b16 %v772, %v771
    %v804 = vpack.c.b16 %v774, %v773
    %v805 = vpack.c.b16 %v776, %v775
    %v806 = vpack.c.b16 %v778, %v777
    %v807 = vpack.c.b16 %v780, %v779
    %v808 = vpack.c.b16 %v782, %v781
    %v809 = vpack.c.b16 %v784, %v783
    %v810 = vpack.c.b16 %v786, %v785
    %835 = vmatprep.subr.bf16.mxu0 0
    %836 = vmatpush1.bf16.msra.mxu0 %v794
    %837 = vmatprep.subr.bf16.mxu0 0
    %838 = vmatpush1.bf16.msra.mxu0 %v793
    %839 = vmatprep.subr.bf16.mxu0 0
    %840 = vmatpush1.bf16.msra.mxu0 %v792
    %841 = vmatprep.subr.bf16.mxu0 0
    %842 = vmatpush1.bf16.msra.mxu0 %v791
    %843 = vmatprep.subr.bf16.mxu0 0
    %844 = vmatpush1.bf16.msra.mxu0 %v790
    %845 = vmatprep.subr.bf16.mxu0 0
    %846 = vmatpush1.bf16.msra.mxu0 %v789
    %847 = vmatprep.subr.bf16.mxu0 0
    %848 = vmatpush1.bf16.msra.mxu0 %v788
    %849 = vmatprep.subr.bf16.mxu0 0
    %850 = vmatpush1.bf16.msra.mxu0 %v787
    %851 = vmatprep.subr.bf16.mxu0 0
    %852 = vmatpush2.bf16.msra.mxu0 %v802
    %853 = vmatprep.subr.bf16.mxu0 0
    %854 = vmatpush2.bf16.msra.mxu0 %v801
    %855 = vmatprep.subr.bf16.mxu0 0
    %856 = vmatpush2.bf16.msra.mxu0 %v800
    %857 = vmatprep.subr.bf16.mxu0 0
    %858 = vmatpush2.bf16.msra.mxu0 %v799
    %859 = vmatprep.subr.bf16.mxu0 0
    %860 = vmatpush2.bf16.msra.mxu0 %v798
    %861 = vmatprep.subr.bf16.mxu0 0
    %862 = vmatpush2.bf16.msra.mxu0 %v797
    %863 = vmatprep.subr.bf16.mxu0 0
    %864 = vmatpush2.bf16.msra.mxu0 %v796
    %865 = vmatprep.subr.bf16.mxu0 0
    %866 = vmatpush2.bf16.msra.mxu0 %v795
    %867 = vmatprep.mubr.bf16.mxu0 %v687
    %868 = vmatmul.mubr.bf16.gmra.mxu0 %v679
    %v869 = vpop.f32.mrf.mxu0
    %v870 = vadd.f32 %v669, %v869
    %v871 = vpop.f32.mrf.mxu0
    %v872 = vpop.f32.mrf.mxu0
    %v873 = vpop.f32.mrf.mxu0
    %874 = vdwg.mxu0
    %875 = vmatprep.subr.bf16.mxu0 0
    %876 = vmatpush1.bf16.msra.mxu0 %v810
    %877 = vmatprep.subr.bf16.mxu0 0
    %878 = vmatpush1.bf16.msra.mxu0 %v809
    %879 = vmatprep.subr.bf16.mxu0 0
    %880 = vmatpush1.bf16.msra.mxu0 %v808
    %881 = vmatprep.subr.bf16.mxu0 0
    %882 = vmatpush1.bf16.msra.mxu0 %v807
    %883 = vmatprep.subr.bf16.mxu0 0
    %884 = vmatpush1.bf16.msra.mxu0 %v806
    %885 = vmatprep.subr.bf16.mxu0 0
    %886 = vmatpush1.bf16.msra.mxu0 %v805
    %887 = vmatprep.subr.bf16.mxu0 0
    %888 = vmatpush1.bf16.msra.mxu0 %v804
    %889 = vmatprep.subr.bf16.mxu0 0
    %890 = vmatpush1.bf16.msra.mxu0 %v803
    %891 = vmatprep.subr.bf16.mxu0 0
    %892 = vmatpush2.bf16.msra.mxu0 0
    %893 = vmatprep.subr.bf16.mxu0 0
    %894 = vmatpush2.bf16.msra.mxu0 0
    %895 = vmatprep.subr.bf16.mxu0 0
    %896 = vmatpush2.bf16.msra.mxu0 0
    %897 = vmatprep.subr.bf16.mxu0 0
    %898 = vmatpush2.bf16.msra.mxu0 0
    %899 = vmatprep.subr.bf16.mxu0 0
    %900 = vmatpush2.bf16.msra.mxu0 0
    %901 = vmatprep.subr.bf16.mxu0 0
    %902 = vmatpush2.bf16.msra.mxu0 0
    %903 = vmatprep.subr.bf16.mxu0 0
    %904 = vmatpush2.bf16.msra.mxu0 0
    %905 = vmatprep.subr.bf16.mxu0 0
    %906 = vmatpush2.bf16.msra.mxu0 0
    %907 = vmatprep.mubr.bf16.mxu0 0
    %908 = vmatmul.mubr.bf16.gmra.mxu0 %v686
    %v909 = vpop.f32.mrf.mxu0
    %v910 = vadd.f32 %v870, %v909
    %v911 = vpop.f32.mrf.mxu0
    %v912 = vpop.f32.mrf.mxu0
    %v913 = vpop.f32.mrf.mxu0
    %914 = vdwg.mxu0
    %v915 = vxor.u32 %v910, 2147483648
    %v916 = vmul.f32 %v915, 1.442695
    %v917 = vpow.pop %v916
    %v918 = vadd.f32 %v917, 1.0
    %v919 = vrcp.pop %v918
    %v920 = vmul.f32 1.0, %v919
    %921 = vst [vmem:[%s5] sm:$0xff] %v920
    // Predicated region
    $region30: #{_lambda_.1} parent=1 // pred_check
      _
    $region31: #{_lambda_.1} parent=1 // pred_check_branch
      %923 = sbr.rel (0) target = $region33
    $region32: #{_lambda_.1} parent=1 // pred_region
      _
    $region33: #{_lambda_.1} parent=1 // pred_fallthru
      _
    // Predicated region
    $region34: #{_lambda_.1} parent=1 // pred_check
      _
    $region35: #{_lambda_.1} parent=1 // pred_check_branch
      %925 = sbr.rel (0) target = $region37
    $region36: #{_lambda_.1} parent=1 // pred_region
      _
    $region37: #{_lambda_.1} parent=1 // pred_fallthru
      _
    %926 = vsyncpa [#allocation3], 1
    %927 = vsyncpa [#allocation5], 1

</llo_original>
